<compile_context>
chip_gen: v7x
topology: tpu7x:2x2x1
jax: 0.10.0
libtpu: 0.0.40
codegen_flags: <defaults>
</compile_context>

<pallas_src>
import jax
import jax.numpy as jnp
from jax.experimental import pallas as pl
from jax.experimental.pallas import tpu as pltpu

C_IN = 2
C_OUT = 1
K = 3


def _conv_kernel(w_ref, b_ref, x_ref, o_ref, pad_ref):
    # w_ref:   SMEM (C_IN*K*K,)  flattened weights for the single output channel
    # b_ref:   SMEM (C_OUT,)     bias
    # x_ref:   VMEM (B_BLK, C_IN, H, W)        un-padded input block
    # o_ref:   VMEM (B_BLK, C_OUT, H, W)       output block
    # pad_ref: VMEM (B_BLK, C_IN, H+2, W+2) f32 scratch holding the zero-padded block
    B, _, H, W = x_ref.shape

    # Fused padding: zero the halo, copy the interior. No HBM round-trip.
    pad_ref[...] = jnp.zeros_like(pad_ref)
    pad_ref[:, :, 1:H + 1, 1:W + 1] = x_ref[...].astype(jnp.float32)

    bias = b_ref[0]
    acc = jnp.zeros((B, H, W), dtype=jnp.float32)

    # Direct conv: 2 (C_IN) x 3 (kh) hoisted row-slab loads, 3 kw lane-slices each,
    # 18 statically-unrolled MACs on the VPU with an f32 accumulator.
    for c in range(C_IN):
        for kh in range(K):
            rows = pad_ref[:, c, kh:kh + H, :]          # (B, H, W+2), one load per (c, kh)
            for kw in range(K):
                w_s = w_ref[c * K * K + kh * K + kw]    # scalar from SMEM
                acc = acc + rows[:, :, kw:kw + W] * w_s

    o_ref[:, 0, :, :] = (acc + bias).astype(o_ref.dtype)


def _choose_batch_block(n, h, w):
    """Largest divisor of n that (a) keeps >=2 grid steps when n>=2 (two v7x TCs)
    and (b) fits a conservative VMEM budget (v7x scoped VMEM is the smallest)."""
    # f32 bytes per image: double-buffered input + padded scratch + double-buffered output.
    per_image = 4 * (2 * C_IN * h * w + C_IN * (h + 2) * (w + 2) + 2 * C_OUT * h * w)
    budget = 8 << 20                       # well under v7x's 64 MiB physical VMEM
    cap = max(1, budget // per_image)
    upper = max(1, min(cap, n // 2 if n > 1 else 1))
    for b in range(upper, 0, -1):
        if n % b == 0:
            return b
    return 1


def conv2d_pallas(x, weight, bias, *, b_blk=None):
    """x: (N, C_IN, H, W) f32; weight: (C_OUT, C_IN, K, K); bias: (C_OUT,)."""
    N, C, H, W = x.shape
    assert C == C_IN and weight.shape == (C_OUT, C_IN, K, K)

    if b_blk is None:
        b_blk = _choose_batch_block(N, H, W)
    assert N % b_blk == 0, "batch must be divisible by the chosen batch block"
    grid = (N // b_blk,)

    w_flat = weight.reshape(-1).astype(jnp.float32)   # (C_OUT*C_IN*K*K,) = (18,)
    b_flat = bias.astype(jnp.float32)                 # (1,)

    # TODO(synk): output lane width is W=16 (<128), so the final vst is still masked;
    # a fully lane-dense output layout needs an in-kernel (H,W)->(H*W) relayout.
    out = pl.pallas_call(
        _conv_kernel,
        out_shape=jax.ShapeDtypeStruct((N, C_OUT, H, W), x.dtype),
        grid_spec=pltpu.PrefetchScalarGridSpec(
            num_scalar_prefetch=0,
            grid=grid,
            in_specs=[
                pl.BlockSpec(memory_space=pltpu.SMEM),   # weights (scalars)
                pl.BlockSpec(memory_space=pltpu.SMEM),   # bias (scalar)
                pl.BlockSpec((b_blk, C_IN, H, W), lambda n: (n, 0, 0, 0)),
            ],
            out_specs=pl.BlockSpec((b_blk, C_OUT, H, W), lambda n: (n, 0, 0, 0)),
            scratch_shapes=[
                pltpu.VMEM((b_blk, C_IN, H + 2, W + 2), jnp.float32),
            ],
        ),
        compiler_params=pltpu.CompilerParams(
            dimension_semantics=("parallel",)),
    )(w_flat, b_flat, x)
    return out


def _reference_conv(x, weight, bias):
    # Pure-JAX reference (NCHW, OIHW weights, padding=1).
    out = jax.lax.conv_general_dilated(
        x, weight, window_strides=(1, 1), padding=((1, 1), (1, 1)),
        dimension_numbers=("NCHW", "OIHW", "NCHW"))
    return out + bias.reshape(1, C_OUT, 1, 1)


if __name__ == "__main__":
    key = jax.random.PRNGKey(0)
    kx, kw, kb = jax.random.split(key, 3)

    N, H, W = 8, 16, 16
    x = jax.random.normal(kx, (N, C_IN, H, W), dtype=jnp.float32)

    # Deterministic parameter init (mimics PyTorch's uniform fan-in init bounds).
    fan_in = C_IN * K * K
    bound = 1.0 / (fan_in ** 0.5)
    weight = jax.random.uniform(kw, (C_OUT, C_IN, K, K), jnp.float32, -bound, bound)
    bias = jax.random.uniform(kb, (C_OUT,), jnp.float32, -bound, bound)

    y = conv2d_pallas(x, weight, bias)
    jax.block_until_ready(y)

    y_ref = _reference_conv(x, weight, bias)
    assert y.shape == (N, C_OUT, H, W)
    assert jnp.allclose(y, y_ref, atol=1e-5, rtol=1e-5)

    print("KERNEL_OK")
</pallas_src>

<mosaic_0001>
module attributes {stable_mosaic.version = 11 : i64} {
  func.func @_conv_kernel(%arg0: i32, %arg1: memref<18xf32, #tpu.memory_space<smem>>, %arg2: memref<1xf32, #tpu.memory_space<smem>>, %arg3: memref<4x2x16x16xf32, #tpu.memory_space<vmem>>, %arg4: memref<4x1x16x16xf32, #tpu.memory_space<vmem>>, %arg5: memref<4x2x18x18xf32, #tpu.memory_space<vmem>>) attributes {dimension_semantics = [#tpu.dimension_semantics<parallel>], iteration_bounds = array<i64: 2>, scalar_prefetch = 0 : i64, scratch_operands = 1 : i64, tpu.core_type = #tpu.core_type<tc>, window_params = [{transform_indices = @transform_0, window_bounds = array<i64: 18>}, {transform_indices = @transform_1, window_bounds = array<i64: 1>}, {transform_indices = @transform_2, window_bounds = array<i64: 4, 2, 16, 16>}, {transform_indices = @transform_3, window_bounds = array<i64: 4, 1, 16, 16>}]} {
    %cst = arith.constant 0.000000e+00 : f32
    %0 = vector.broadcast %cst : f32 to vector<4x2x18x18xf32>
    %c0 = arith.constant 0 : index
    %c0_0 = arith.constant 0 : index
    %c0_1 = arith.constant 0 : index
    %c0_2 = arith.constant 0 : index
    %1 = vector.load %arg5[%c0, %c0_0, %c0_1, %c0_2] : memref<4x2x18x18xf32, #tpu.memory_space<vmem>>, vector<4x2x18x18xf32>
    tpu.vector_store %arg5[%c0, %c0_0, %c0_1, %c0_2], %0 {strides = array<i32>} : memref<4x2x18x18xf32, #tpu.memory_space<vmem>>, vector<4x2x18x18xf32>,
    %c0_3 = arith.constant 0 : index
    %c0_4 = arith.constant 0 : index
    %c0_5 = arith.constant 0 : index
    %c0_6 = arith.constant 0 : index
    %2 = vector.load %arg3[%c0_3, %c0_4, %c0_5, %c0_6] : memref<4x2x16x16xf32, #tpu.memory_space<vmem>>, vector<4x2x16x16xf32>
    %c0_7 = arith.constant 0 : index
    %c0_8 = arith.constant 0 : index
    %c1 = arith.constant 1 : index
    %c1_9 = arith.constant 1 : index
    %3 = vector.load %arg5[%c0_7, %c0_8, %c1, %c1_9] : memref<4x2x18x18xf32, #tpu.memory_space<vmem>>, vector<4x2x16x16xf32>
    tpu.vector_store %arg5[%c0_7, %c0_8, %c1, %c1_9], %2 {strides = array<i32>} : memref<4x2x18x18xf32, #tpu.memory_space<vmem>>, vector<4x2x16x16xf32>,
    %c0_10 = arith.constant 0 : index
    %4 = memref.load %arg2[%c0_10] : memref<1xf32, #tpu.memory_space<smem>>
    %cst_11 = arith.constant 0.000000e+00 : f32
    %5 = vector.broadcast %cst_11 : f32 to vector<4x16x16xf32>
    %c0_12 = arith.constant 0 : index
    %c0_13 = arith.constant 0 : index
    %c0_14 = arith.constant 0 : index
    %c0_15 = arith.constant 0 : index
    %6 = vector.load %arg5[%c0_12, %c0_13, %c0_14, %c0_15] : memref<4x2x18x18xf32, #tpu.memory_space<vmem>>, vector<4x1x16x18xf32>
    %7 = vector.shape_cast %6 : vector<4x1x16x18xf32> to vector<4x16x18xf32>
    %c0_16 = arith.constant 0 : index
    %8 = memref.load %arg1[%c0_16] : memref<18xf32, #tpu.memory_space<smem>>
    %9 = vector.extract_strided_slice %7 {offsets = [0, 0, 0], sizes = [4, 16, 16], strides = [1, 1, 1]} : vector<4x16x18xf32> to vector<4x16x16xf32>
    %10 = vector.broadcast %8 : f32 to vector<4x16x16xf32>
    %11 = arith.mulf %9, %10 : vector<4x16x16xf32>
    %12 = arith.addf %5, %11 : vector<4x16x16xf32>
    %c1_17 = arith.constant 1 : index
    %13 = memref.load %arg1[%c1_17] : memref<18xf32, #tpu.memory_space<smem>>
    %14 = vector.extract_strided_slice %7 {offsets = [0, 0, 1], sizes = [4, 16, 16], strides = [1, 1, 1]} : vector<4x16x18xf32> to vector<4x16x16xf32>
    %15 = vector.broadcast %13 : f32 to vector<4x16x16xf32>
    %16 = arith.mulf %14, %15 : vector<4x16x16xf32>
    %17 = arith.addf %12, %16 : vector<4x16x16xf32>
    %c2 = arith.constant 2 : index
    %18 = memref.load %arg1[%c2] : memref<18xf32, #tpu.memory_space<smem>>
    %19 = vector.extract_strided_slice %7 {offsets = [0, 0, 2], sizes = [4, 16, 16], strides = [1, 1, 1]} : vector<4x16x18xf32> to vector<4x16x16xf32>
    %20 = vector.broadcast %18 : f32 to vector<4x16x16xf32>
    %21 = arith.mulf %19, %20 : vector<4x16x16xf32>
    %22 = arith.addf %17, %21 : vector<4x16x16xf32>
    %c0_18 = arith.constant 0 : index
    %c0_19 = arith.constant 0 : index
    %c1_20 = arith.constant 1 : index
    %c0_21 = arith.constant 0 : index
    %23 = vector.load %arg5[%c0_18, %c0_19, %c1_20, %c0_21] : memref<4x2x18x18xf32, #tpu.memory_space<vmem>>, vector<4x1x16x18xf32>
    %24 = vector.shape_cast %23 : vector<4x1x16x18xf32> to vector<4x16x18xf32>
    %c3 = arith.constant 3 : index
    %25 = memref.load %arg1[%c3] : memref<18xf32, #tpu.memory_space<smem>>
    %26 = vector.extract_strided_slice %24 {offsets = [0, 0, 0], sizes = [4, 16, 16], strides = [1, 1, 1]} : vector<4x16x18xf32> to vector<4x16x16xf32>
    %27 = vector.broadcast %25 : f32 to vector<4x16x16xf32>
    %28 = arith.mulf %26, %27 : vector<4x16x16xf32>
    %29 = arith.addf %22, %28 : vector<4x16x16xf32>
    %c4 = arith.constant 4 : index
    %30 = memref.load %arg1[%c4] : memref<18xf32, #tpu.memory_space<smem>>
    %31 = vector.extract_strided_slice %24 {offsets = [0, 0, 1], sizes = [4, 16, 16], strides = [1, 1, 1]} : vector<4x16x18xf32> to vector<4x16x16xf32>
    %32 = vector.broadcast %30 : f32 to vector<4x16x16xf32>
    %33 = arith.mulf %31, %32 : vector<4x16x16xf32>
    %34 = arith.addf %29, %33 : vector<4x16x16xf32>
    %c5 = arith.constant 5 : index
    %35 = memref.load %arg1[%c5] : memref<18xf32, #tpu.memory_space<smem>>
    %36 = vector.extract_strided_slice %24 {offsets = [0, 0, 2], sizes = [4, 16, 16], strides = [1, 1, 1]} : vector<4x16x18xf32> to vector<4x16x16xf32>
    %37 = vector.broadcast %35 : f32 to vector<4x16x16xf32>
    %38 = arith.mulf %36, %37 : vector<4x16x16xf32>
    %39 = arith.addf %34, %38 : vector<4x16x16xf32>
    %c0_22 = arith.constant 0 : index
    %c0_23 = arith.constant 0 : index
    %c2_24 = arith.constant 2 : index
    %c0_25 = arith.constant 0 : index
    %40 = vector.load %arg5[%c0_22, %c0_23, %c2_24, %c0_25] : memref<4x2x18x18xf32, #tpu.memory_space<vmem>>, vector<4x1x16x18xf32>
    %41 = vector.shape_cast %40 : vector<4x1x16x18xf32> to vector<4x16x18xf32>
    %c6 = arith.constant 6 : index
    %42 = memref.load %arg1[%c6] : memref<18xf32, #tpu.memory_space<smem>>
    %43 = vector.extract_strided_slice %41 {offsets = [0, 0, 0], sizes = [4, 16, 16], strides = [1, 1, 1]} : vector<4x16x18xf32> to vector<4x16x16xf32>
    %44 = vector.broadcast %42 : f32 to vector<4x16x16xf32>
    %45 = arith.mulf %43, %44 : vector<4x16x16xf32>
    %46 = arith.addf %39, %45 : vector<4x16x16xf32>
    %c7 = arith.constant 7 : index
    %47 = memref.load %arg1[%c7] : memref<18xf32, #tpu.memory_space<smem>>
    %48 = vector.extract_strided_slice %41 {offsets = [0, 0, 1], sizes = [4, 16, 16], strides = [1, 1, 1]} : vector<4x16x18xf32> to vector<4x16x16xf32>
    %49 = vector.broadcast %47 : f32 to vector<4x16x16xf32>
    %50 = arith.mulf %48, %49 : vector<4x16x16xf32>
    %51 = arith.addf %46, %50 : vector<4x16x16xf32>
    %c8 = arith.constant 8 : index
    %52 = memref.load %arg1[%c8] : memref<18xf32, #tpu.memory_space<smem>>
    %53 = vector.extract_strided_slice %41 {offsets = [0, 0, 2], sizes = [4, 16, 16], strides = [1, 1, 1]} : vector<4x16x18xf32> to vector<4x16x16xf32>
    %54 = vector.broadcast %52 : f32 to vector<4x16x16xf32>
    %55 = arith.mulf %53, %54 : vector<4x16x16xf32>
    %56 = arith.addf %51, %55 : vector<4x16x16xf32>
    %c0_26 = arith.constant 0 : index
    %c1_27 = arith.constant 1 : index
    %c0_28 = arith.constant 0 : index
    %c0_29 = arith.constant 0 : index
    %57 = vector.load %arg5[%c0_26, %c1_27, %c0_28, %c0_29] : memref<4x2x18x18xf32, #tpu.memory_space<vmem>>, vector<4x1x16x18xf32>
    %58 = vector.shape_cast %57 : vector<4x1x16x18xf32> to vector<4x16x18xf32>
    %c9 = arith.constant 9 : index
    %59 = memref.load %arg1[%c9] : memref<18xf32, #tpu.memory_space<smem>>
    %60 = vector.extract_strided_slice %58 {offsets = [0, 0, 0], sizes = [4, 16, 16], strides = [1, 1, 1]} : vector<4x16x18xf32> to vector<4x16x16xf32>
    %61 = vector.broadcast %59 : f32 to vector<4x16x16xf32>
    %62 = arith.mulf %60, %61 : vector<4x16x16xf32>
    %63 = arith.addf %56, %62 : vector<4x16x16xf32>
    %c10 = arith.constant 10 : index
    %64 = memref.load %arg1[%c10] : memref<18xf32, #tpu.memory_space<smem>>
    %65 = vector.extract_strided_slice %58 {offsets = [0, 0, 1], sizes = [4, 16, 16], strides = [1, 1, 1]} : vector<4x16x18xf32> to vector<4x16x16xf32>
    %66 = vector.broadcast %64 : f32 to vector<4x16x16xf32>
    %67 = arith.mulf %65, %66 : vector<4x16x16xf32>
    %68 = arith.addf %63, %67 : vector<4x16x16xf32>
    %c11 = arith.constant 11 : index
    %69 = memref.load %arg1[%c11] : memref<18xf32, #tpu.memory_space<smem>>
    %70 = vector.extract_strided_slice %58 {offsets = [0, 0, 2], sizes = [4, 16, 16], strides = [1, 1, 1]} : vector<4x16x18xf32> to vector<4x16x16xf32>
    %71 = vector.broadcast %69 : f32 to vector<4x16x16xf32>
    %72 = arith.mulf %70, %71 : vector<4x16x16xf32>
    %73 = arith.addf %68, %72 : vector<4x16x16xf32>
    %c0_30 = arith.constant 0 : index
    %c1_31 = arith.constant 1 : index
    %c1_32 = arith.constant 1 : index
    %c0_33 = arith.constant 0 : index
    %74 = vector.load %arg5[%c0_30, %c1_31, %c1_32, %c0_33] : memref<4x2x18x18xf32, #tpu.memory_space<vmem>>, vector<4x1x16x18xf32>
    %75 = vector.shape_cast %74 : vector<4x1x16x18xf32> to vector<4x16x18xf32>
    %c12 = arith.constant 12 : index
    %76 = memref.load %arg1[%c12] : memref<18xf32, #tpu.memory_space<smem>>
    %77 = vector.extract_strided_slice %75 {offsets = [0, 0, 0], sizes = [4, 16, 16], strides = [1, 1, 1]} : vector<4x16x18xf32> to vector<4x16x16xf32>
    %78 = vector.broadcast %76 : f32 to vector<4x16x16xf32>
    %79 = arith.mulf %77, %78 : vector<4x16x16xf32>
    %80 = arith.addf %73, %79 : vector<4x16x16xf32>
    %c13 = arith.constant 13 : index
    %81 = memref.load %arg1[%c13] : memref<18xf32, #tpu.memory_space<smem>>
    %82 = vector.extract_strided_slice %75 {offsets = [0, 0, 1], sizes = [4, 16, 16], strides = [1, 1, 1]} : vector<4x16x18xf32> to vector<4x16x16xf32>
    %83 = vector.broadcast %81 : f32 to vector<4x16x16xf32>
    %84 = arith.mulf %82, %83 : vector<4x16x16xf32>
    %85 = arith.addf %80, %84 : vector<4x16x16xf32>
    %c14 = arith.constant 14 : index
    %86 = memref.load %arg1[%c14] : memref<18xf32, #tpu.memory_space<smem>>
    %87 = vector.extract_strided_slice %75 {offsets = [0, 0, 2], sizes = [4, 16, 16], strides = [1, 1, 1]} : vector<4x16x18xf32> to vector<4x16x16xf32>
    %88 = vector.broadcast %86 : f32 to vector<4x16x16xf32>
    %89 = arith.mulf %87, %88 : vector<4x16x16xf32>
    %90 = arith.addf %85, %89 : vector<4x16x16xf32>
    %c0_34 = arith.constant 0 : index
    %c1_35 = arith.constant 1 : index
    %c2_36 = arith.constant 2 : index
    %c0_37 = arith.constant 0 : index
    %91 = vector.load %arg5[%c0_34, %c1_35, %c2_36, %c0_37] : memref<4x2x18x18xf32, #tpu.memory_space<vmem>>, vector<4x1x16x18xf32>
    %92 = vector.shape_cast %91 : vector<4x1x16x18xf32> to vector<4x16x18xf32>
    %c15 = arith.constant 15 : index
    %93 = memref.load %arg1[%c15] : memref<18xf32, #tpu.memory_space<smem>>
    %94 = vector.extract_strided_slice %92 {offsets = [0, 0, 0], sizes = [4, 16, 16], strides = [1, 1, 1]} : vector<4x16x18xf32> to vector<4x16x16xf32>
    %95 = vector.broadcast %93 : f32 to vector<4x16x16xf32>
    %96 = arith.mulf %94, %95 : vector<4x16x16xf32>
    %97 = arith.addf %90, %96 : vector<4x16x16xf32>
    %c16 = arith.constant 16 : index
    %98 = memref.load %arg1[%c16] : memref<18xf32, #tpu.memory_space<smem>>
    %99 = vector.extract_strided_slice %92 {offsets = [0, 0, 1], sizes = [4, 16, 16], strides = [1, 1, 1]} : vector<4x16x18xf32> to vector<4x16x16xf32>
    %100 = vector.broadcast %98 : f32 to vector<4x16x16xf32>
    %101 = arith.mulf %99, %100 : vector<4x16x16xf32>
    %102 = arith.addf %97, %101 : vector<4x16x16xf32>
    %c17 = arith.constant 17 : index
    %103 = memref.load %arg1[%c17] : memref<18xf32, #tpu.memory_space<smem>>
    %104 = vector.extract_strided_slice %92 {offsets = [0, 0, 2], sizes = [4, 16, 16], strides = [1, 1, 1]} : vector<4x16x18xf32> to vector<4x16x16xf32>
    %105 = vector.broadcast %103 : f32 to vector<4x16x16xf32>
    %106 = arith.mulf %104, %105 : vector<4x16x16xf32>
    %107 = arith.addf %102, %106 : vector<4x16x16xf32>
    %108 = vector.broadcast %4 : f32 to vector<4x16x16xf32>
    %109 = arith.addf %107, %108 : vector<4x16x16xf32>
    %c0_38 = arith.constant 0 : index
    %c0_39 = arith.constant 0 : index
    %c0_40 = arith.constant 0 : index
    %c0_41 = arith.constant 0 : index
    %110 = vector.load %arg4[%c0_38, %c0_39, %c0_40, %c0_41] : memref<4x1x16x16xf32, #tpu.memory_space<vmem>>, vector<4x1x16x16xf32>
    %111 = vector.shape_cast %110 : vector<4x1x16x16xf32> to vector<4x16x16xf32>
    %112 = vector.shape_cast %109 : vector<4x16x16xf32> to vector<4x1x16x16xf32>
    tpu.vector_store %arg4[%c0_38, %c0_39, %c0_40, %c0_41], %112 {strides = array<i32>} : memref<4x1x16x16xf32, #tpu.memory_space<vmem>>, vector<4x1x16x16xf32>,
    return
  }
  func.func @transform_0(%arg0: i32) -> i32 {
    %c0_i32 = arith.constant 0 : i32
    %c0_i32_0 = arith.constant 0 : i32
    return %c0_i32 : i32
  }
  func.func @transform_1(%arg0: i32) -> i32 {
    %c0_i32 = arith.constant 0 : i32
    %c0_i32_0 = arith.constant 0 : i32
    return %c0_i32 : i32
  }
  func.func @transform_2(%arg0: i32) -> (i32, i32, i32, i32) {
    %c0_i32 = arith.constant 0 : i32
    %c0_i32_0 = arith.constant 0 : i32
    %c0_i32_1 = arith.constant 0 : i32
    %c0_i32_2 = arith.constant 0 : i32
    return %arg0, %c0_i32, %c0_i32_0, %c0_i32_1 : i32, i32, i32, i32
  }
  func.func @transform_3(%arg0: i32) -> (i32, i32, i32, i32) {
    %c0_i32 = arith.constant 0 : i32
    %c0_i32_0 = arith.constant 0 : i32
    %c0_i32_1 = arith.constant 0 : i32
    %c0_i32_2 = arith.constant 0 : i32
    return %arg0, %c0_i32, %c0_i32_0, %c0_i32_1 : i32, i32, i32, i32
  }
}

</mosaic_0001>

<llo_original>
// kernel: tpu_custom_call.1
$region0: #{tpu_custom_call.1}
  #allocation0 [shape = 'u32[]', space=smem, size = 0x4, offset = 0x4, fixed_abs, tag = 'smem constant byte address 0x4 - core index']
  #allocation1 [shape = 'u32[144,128]{1,0:T(1,128)}', space=vmem, size = 0x12000, scoped, tag = 'internal scratch']
  #allocation2 [shape = 'f32[4,2,18,18]{3,2,1,0:T(8,128)}', space=vmem, size = 0x18000, scoped, tag = 'scratch operand']
  #allocation3 [shape = 'f32[1]{0:T(128)S(6)}', space=smem, size = 0x200, scoped, tag = 'scoped memory for tpu_custom_call.1']
  %s0 = inlined_call_operand.vmem [shape: f32[18], index: 0, kind: input, shape index: {}]
  %s1 = inlined_call_operand.<no memory space> [shape: f32[1], index: 1, kind: input, shape index: {}]
  %s2 = inlined_call_operand.hbm [shape: f32[8,2,16,16], index: 2, kind: input, shape index: {}]
  %s3 = inlined_call_operand.hbm [shape: f32[8,1,16,16], index: 3, kind: output, shape index: {}]
  %s4 = sld [smem:[#allocation0]]
  $region53: #{tpu_custom_call.1} parent=0
    _
  %s6 = ssub.s32 1, %s4
  %s7 = scalar_select 0, %s6, %s4
  %8 = sst [smem:[#allocation3]] %s1
  $region1: #{tpu_custom_call.1} parent=0
    #allocation4 [shape = 'u8[512]{0}', space=smem, size = 0x200, scoped, tag = 'input window, operand 0, single buffered']
    #allocation5 [shape = 's32[2]{0}', space=sflag, size = 0x8, scoped, tag = 'scoped memory for tpu_custom_call.1']
    #allocation6 [shape = 's32[2]{0}', space=sflag, size = 0x8, scoped, tag = 'scoped memory for tpu_custom_call.1']
    #allocation7 [shape = 's32[2]{0}', space=sflag, size = 0x8, scoped, tag = 'scoped memory for tpu_custom_call.1']
    #allocation8 [shape = 'u8[131072]{0}', space=vmem, size = 0x20000, scoped, tag = 'input window, operand 2']
    #allocation9 [shape = 'u8[65536]{0}', space=vmem, size = 0x10000, scoped, tag = 'output window, operand 0']
    %9 = vsyncpa [#allocation7], 0
    %10 = vsyncpa [#allocation5], 0
    %s11 = scalar_lea.sflag [#allocation5], 1
    %12 = vsyncpa %s11, 0
    %13 = vsyncpa [#allocation6], 0
    %s14 = scalar_lea.sflag [#allocation6], 1
    %15 = vsyncpa %s14, 0
    loop: start=0, step=1, limit=4
    $region2: #{tpu_custom_call.1} parent=1 // loop_pre_header
      _
    $region3: #{tpu_custom_call.1} parent=1 // loop_header
      %s17 = sphi 0, %s21
      %p18 = scmp.ge.s32.totalorder %s17, 4
      %s25 = sphi 0, %s25
      %s27 = sphi 0, %s25
      %s28 = sphi 0, %s27
      %s42 = sphi 0, %s28
      %s46 = sphi 0, %s46
      %s48 = sphi 0, %s46
      %s49 = sphi 0, %s48
      %s63 = sphi 0, %s49
      %s69 = sphi 0, %s71
      %s72 = sphi 0, %s69
      %s73 = sphi 0, %s72
      %s89 = sphi 0, %s73
      %s95 = sphi 0, %s97
      %s98 = sphi 0, %s95
      %s99 = sphi 0, %s98
      %s115 = sphi 0, %s99
    $region4: #{tpu_custom_call.1} parent=1 // loop_header_branch
      %20 = sbr.rel (%p18) target = $region8
    $region5: #{tpu_custom_call.1} parent=1 // loop_body
      %s22 = ssub.s32 %s17, 1
      %s23 = ssub.s32 %s17, 2
      %s24 = sadd.s32 %s17, 1
      %s26 = sadd.s32 %s25, 1
      %p29 = scmp.eq.s32.totalorder %s17, 1
      %p30 = scmp.ne.s32.totalorder %s25, %s27
      %p31 = scmp.eq.s32.totalorder %s17, 0
      %p32 = por %p30, %p31
      %p33 = scmp.ne.s32.totalorder %s25, %s27
      %p34 = scmp.eq.s32.totalorder %s22, 1
      %p35 = por %p33, %p34
      %p36 = scmp.ne.s32.totalorder %s27, %s28
      %p37 = scmp.eq.s32.totalorder %s22, 0
      %p38 = por %p36, %p37
      %p39 = scmp.ne.s32.totalorder %s27, %s28
      %p40 = scmp.eq.s32.totalorder %s23, 1
      %p41 = por %p39, %p40
      %p43 = scmp.ne.s32.totalorder %s28, %s42
      %p44 = scmp.eq.s32.totalorder %s23, 0
      %p45 = por %p43, %p44
      %s47 = sadd.s32 %s46, 1
      %p50 = scmp.eq.s32.totalorder %s17, 1
      %p51 = scmp.ne.s32.totalorder %s46, %s48
      %p52 = scmp.eq.s32.totalorder %s17, 0
      %p53 = por %p51, %p52
      %p54 = scmp.ne.s32.totalorder %s46, %s48
      %p55 = scmp.eq.s32.totalorder %s22, 1
      %p56 = por %p54, %p55
      %p57 = scmp.ne.s32.totalorder %s48, %s49
      %p58 = scmp.eq.s32.totalorder %s22, 0
      %p59 = por %p57, %p58
      %p60 = scmp.ne.s32.totalorder %s48, %s49
      %p61 = scmp.eq.s32.totalorder %s23, 1
      %p62 = por %p60, %p61
      %p64 = scmp.ne.s32.totalorder %s49, %s63
      %p65 = scmp.eq.s32.totalorder %s23, 0
      %p66 = por %p64, %p65
      %s67 = ssub.s32 %s17, %s24
      %p68 = scmp.eq.s32.totalorder %s67, 0
      %s70 = sadd.s32 %s69, 1
      %s71 = scalar_select %p68, %s69, %s70
      %p74 = pneg %p68
      %p75 = scmp.eq.s32.totalorder %s17, 1
      %p76 = por %p74, %p75
      %p77 = scmp.ne.s32.totalorder %s69, %s72
      %p78 = scmp.eq.s32.totalorder %s17, 0
      %p79 = por %p77, %p78
      %p80 = scmp.ne.s32.totalorder %s69, %s72
      %p81 = scmp.eq.s32.totalorder %s22, 1
      %p82 = por %p80, %p81
      %p83 = scmp.ne.s32.totalorder %s72, %s73
      %p84 = scmp.eq.s32.totalorder %s22, 0
      %p85 = por %p83, %p84
      %p86 = scmp.ne.s32.totalorder %s72, %s73
      %p87 = scmp.eq.s32.totalorder %s23, 1
      %p88 = por %p86, %p87
      %p90 = scmp.ne.s32.totalorder %s73, %s89
      %p91 = scmp.eq.s32.totalorder %s23, 0
      %p92 = por %p90, %p91
      %s93 = ssub.s32 %s17, %s24
      %p94 = scmp.eq.s32.totalorder %s93, 0
      %s96 = sadd.s32 %s95, 1
      %s97 = scalar_select %p94, %s95, %s96
      %p100 = pneg %p94
      %p101 = scmp.eq.s32.totalorder %s17, 1
      %p102 = por %p100, %p101
      %p103 = scmp.ne.s32.totalorder %s95, %s98
      %p104 = scmp.eq.s32.totalorder %s17, 0
      %p105 = por %p103, %p104
      %p106 = scmp.ne.s32.totalorder %s95, %s98
      %p107 = scmp.eq.s32.totalorder %s22, 1
      %p108 = por %p106, %p107
      %p109 = scmp.ne.s32.totalorder %s98, %s99
      %p110 = scmp.eq.s32.totalorder %s22, 0
      %p111 = por %p109, %p110
      %p112 = scmp.ne.s32.totalorder %s98, %s99
      %p113 = scmp.eq.s32.totalorder %s23, 1
      %p114 = por %p112, %p113
      %p116 = scmp.ne.s32.totalorder %s99, %s115
      %p117 = scmp.eq.s32.totalorder %s23, 0
      %p118 = por %p116, %p117
      %p119 = scmp.le.s32.totalorder 1, %s17
      %p120 = scmp.lt.s32.totalorder %s17, 3
      %p121 = pnand %p119, %p120
      %p122 = pneg %p121
      // Predicated region
      $region9: #{tpu_custom_call.1} parent=5 // pred_check
        _
      $region10: #{tpu_custom_call.1} parent=5 // pred_check_branch
        %124 = sbr.rel (%p121) target = $region12
      $region11: #{tpu_custom_call.1} parent=5 // pred_region
        %s125 = ssub.s32 %s17, 1
        // Predicated region
        $region13: #{tpu_custom_call.1} parent=11 // pred_check
          %p126 = pneg %p38
        $region14: #{tpu_custom_call.1} parent=11 // pred_check_branch
          %128 = sbr.rel (%p126) target = $region16
        $region15: #{tpu_custom_call.1} parent=11 // pred_region
          %s130 = ssub.s32 16, 16
          %131 = vsyncadd [#allocation7], %s130
          %s133 = sshll.u32 %s0, 4
          %s134 = int_to_ptr.vmem [resolvable:$true] %s133
          %136 = dma.vmem_to_smem %s134, 16, [#allocation4], [#allocation7]
        $region16: #{tpu_custom_call.1} parent=11 // pred_fallthru
          _
        // Predicated region
        $region17: #{tpu_custom_call.1} parent=11 // pred_check
          %p137 = pneg %p59
        $region18: #{tpu_custom_call.1} parent=11 // pred_check_branch
          %139 = sbr.rel (%p137) target = $region20
        $region19: #{tpu_custom_call.1} parent=11 // pred_region
          _
        $region20: #{tpu_custom_call.1} parent=11 // pred_fallthru
          _
      $region12: #{tpu_custom_call.1} parent=5 // pred_fallthru
        _
      %p140 = scmp.lt.s32.totalorder %s17, 2
      // Predicated region
      $region21: #{tpu_custom_call.1} parent=5 // pred_check
        %p141 = pneg %p140
      $region22: #{tpu_custom_call.1} parent=5 // pred_check_branch
        %143 = sbr.rel (%p141) target = $region24
      $region23: #{tpu_custom_call.1} parent=5 // pred_region
        // Predicated region
        $region25: #{tpu_custom_call.1} parent=23 // pred_check
          %p144 = pneg %p79
        $region26: #{tpu_custom_call.1} parent=23 // pred_check_branch
          %146 = sbr.rel (%p144) target = $region28
        $region27: #{tpu_custom_call.1} parent=23 // pred_region
          %s147 = sand.u32 %s69, 1
          %s148 = scalar_lea.sflag [#allocation5], %s147
          %s149 = sand.u32 %s69, 1
          %s150 = smul.addr %s149, 128
          %s151 = scalar_lea.vmem [#allocation8], %s150
          %s152 = smul.u32 4, %s17
          %s154 = ssub.s32 2048, 2048
          %155 = vsyncadd %s148, %s154
          %s156 = smul.addr %s152, 4
          %s157 = smul.addr %s156, 128
          %s158 = scalar_lea.hbm %s2, %s157
          %s159 = sshll.u32 %s151, 4
          %s160 = int_to_ptr.vmem [resolvable:$true] %s159
          %165 = dma.hbm_to_vmem [thread:$0]  %s158, 2048, %s160, %s148, 128, 128, 8
        $region28: #{tpu_custom_call.1} parent=23 // pred_fallthru
          _
      $region24: #{tpu_custom_call.1} parent=5 // pred_fallthru
        _
      %p166 = scmp.le.s32.totalorder 1, %s17
      %p167 = scmp.lt.s32.totalorder %s17, 3
      %p168 = pnand %p166, %p167
      %p169 = pneg %p168
      // Predicated region
      $region29: #{tpu_custom_call.1} parent=5 // pred_check
        _
      $region30: #{tpu_custom_call.1} parent=5 // pred_check_branch
        %171 = sbr.rel (%p168) target = $region32
      $region31: #{tpu_custom_call.1} parent=5 // pred_region
        %s172 = ssub.s32 %s17, 1
        // Predicated region
        $region33: #{tpu_custom_call.1} parent=31 // pred_check
          %p173 = pneg %p38
        $region34: #{tpu_custom_call.1} parent=31 // pred_check_branch
          %175 = sbr.rel (%p173) target = $region36
        $region35: #{tpu_custom_call.1} parent=31 // pred_region
          %176 = dma.done [#allocation7], 16
        $region36: #{tpu_custom_call.1} parent=31 // pred_fallthru
          _
        %s177 = sand.u32 %s72, 1
        %s178 = scalar_lea.sflag [#allocation5], %s177
        %s179 = sand.u32 %s72, 1
        %s180 = smul.addr %s179, 128
        %s181 = scalar_lea.vmem [#allocation8], %s180
        // Predicated region
        $region37: #{tpu_custom_call.1} parent=31 // pred_check
          %p182 = pneg %p85
        $region38: #{tpu_custom_call.1} parent=31 // pred_check_branch
          %184 = sbr.rel (%p182) target = $region40
        $region39: #{tpu_custom_call.1} parent=31 // pred_region
          %185 = dma.done %s178, 2048
        $region40: #{tpu_custom_call.1} parent=31 // pred_fallthru
          _
        %186 = sfence
        %p187 = pneg %p38
        %p188 = pneg %p35
        %p189 = pneg %p59
        %p190 = pneg %p56
        %s191 = sand.u32 %s72, 1
        %s192 = scalar_lea.sflag [#allocation5], %s191
        %s193 = sand.u32 %s72, 1
        %s194 = smul.addr %s193, 128
        %s195 = scalar_lea.vmem [#allocation8], %s194
        %p196 = pneg %p85
        %p197 = pneg %p82
        %p198 = pneg %p111
        %p199 = pneg %p108
        %s200 = sand.u32 %s98, 1
        %s201 = scalar_lea.sflag [#allocation6], %s200
        %s202 = sand.u32 %s98, 1
        %s203 = smul.addr %s202, 64
        %s204 = scalar_lea.vmem [#allocation9], %s203
        %s205 = smul.u32 4, %s22
        %s206 = smul.u32 4, %s22
        %vm207 = vcmask 146432
        %208 = vst.msk [vmem:[#allocation2] sm:$0xff] %vm207, 0.0
        %209 = vst.msk [vmem:[#allocation2 + $0x8] sm:$0xff] %vm207, 0.0
        %vm210 = vcmask 140288
        %211 = vst.msk [vmem:[#allocation2 + $0x10] sm:$0x3] %vm210, 0.0
        %212 = vst.msk [vmem:[#allocation2 + $0x18] sm:$0xff] %vm207, 0.0
        %213 = vst.msk [vmem:[#allocation2 + $0x20] sm:$0xff] %vm207, 0.0
        %214 = vst.msk [vmem:[#allocation2 + $0x28] sm:$0x3] %vm210, 0.0
        %215 = vst.msk [vmem:[#allocation2 + $0x30] sm:$0xff] %vm207, 0.0
        %216 = vst.msk [vmem:[#allocation2 + $0x38] sm:$0xff] %vm207, 0.0
        %217 = vst.msk [vmem:[#allocation2 + $0x40] sm:$0x3] %vm210, 0.0
        %218 = vst.msk [vmem:[#allocation2 + $0x48] sm:$0xff] %vm207, 0.0
        %219 = vst.msk [vmem:[#allocation2 + $0x50] sm:$0xff] %vm207, 0.0
        %220 = vst.msk [vmem:[#allocation2 + $0x58] sm:$0x3] %vm210, 0.0
        %221 = vst.msk [vmem:[#allocation2 + $0x60] sm:$0xff] %vm207, 0.0
        %222 = vst.msk [vmem:[#allocation2 + $0x68] sm:$0xff] %vm207, 0.0
        %223 = vst.msk [vmem:[#allocation2 + $0x70] sm:$0x3] %vm210, 0.0
        %224 = vst.msk [vmem:[#allocation2 + $0x78] sm:$0xff] %vm207, 0.0
        %225 = vst.msk [vmem:[#allocation2 + $0x80] sm:$0xff] %vm207, 0.0
        %226 = vst.msk [vmem:[#allocation2 + $0x88] sm:$0x3] %vm210, 0.0
        %227 = vst.msk [vmem:[#allocation2 + $0x90] sm:$0xff] %vm207, 0.0
        %228 = vst.msk [vmem:[#allocation2 + $0x98] sm:$0xff] %vm207, 0.0
        %229 = vst.msk [vmem:[#allocation2 + $0xa0] sm:$0x3] %vm210, 0.0
        %230 = vst.msk [vmem:[#allocation2 + $0xa8] sm:$0xff] %vm207, 0.0
        %231 = vst.msk [vmem:[#allocation2 + $0xb0] sm:$0xff] %vm207, 0.0
        %232 = vst.msk [vmem:[#allocation2 + $0xb8] sm:$0x3] %vm210, 0.0
        %v233 = vld [vmem:[%s181] sm:$0xff]
        %v234 = vld [vmem:[%s181 + $0x8] sm:$0xff]
        %v235 = vld [vmem:[%s181 + $0x10] sm:$0xff]
        %v236 = vld [vmem:[%s181 + $0x18] sm:$0xff]
        %v237 = vld [vmem:[%s181 + $0x20] sm:$0xff]
        %v238 = vld [vmem:[%s181 + $0x28] sm:$0xff]
        %v239 = vld [vmem:[%s181 + $0x30] sm:$0xff]
        %v240 = vld [vmem:[%s181 + $0x38] sm:$0xff]
        %v241 = vld [vmem:[%s181 + $0x40] sm:$0xff]
        %v242 = vld [vmem:[%s181 + $0x48] sm:$0xff]
        %v243 = vld [vmem:[%s181 + $0x50] sm:$0xff]
        %v244 = vld [vmem:[%s181 + $0x58] sm:$0xff]
        %v245 = vld [vmem:[%s181 + $0x60] sm:$0xff]
        %v246 = vld [vmem:[%s181 + $0x68] sm:$0xff]
        %v247 = vld [vmem:[%s181 + $0x70] sm:$0xff]
        %v248 = vld [vmem:[%s181 + $0x78] sm:$0xff]
        %265 = vrot.lane.b32.xlu0 %v233, 1
        %v266 = vpop.permute.xlu0 %265
        %267 = vrot.lane.b32.xlu0 %v234, 1
        %v268 = vpop.permute.xlu0 %267
        %269 = vrot.lane.b32.xlu0 %v235, 1
        %v270 = vpop.permute.xlu0 %269
        %271 = vrot.lane.b32.xlu0 %v236, 1
        %v272 = vpop.permute.xlu0 %271
        %273 = vrot.lane.b32.xlu0 %v237, 1
        %v274 = vpop.permute.xlu0 %273
        %275 = vrot.lane.b32.xlu0 %v238, 1
        %v276 = vpop.permute.xlu0 %275
        %277 = vrot.lane.b32.xlu0 %v239, 1
        %v278 = vpop.permute.xlu0 %277
        %279 = vrot.lane.b32.xlu0 %v240, 1
        %v280 = vpop.permute.xlu0 %279
        %281 = vrot.lane.b32.xlu0 %v241, 1
        %v282 = vpop.permute.xlu0 %281
        %283 = vrot.lane.b32.xlu0 %v242, 1
        %v284 = vpop.permute.xlu0 %283
        %285 = vrot.lane.b32.xlu0 %v243, 1
        %v286 = vpop.permute.xlu0 %285
        %287 = vrot.lane.b32.xlu0 %v244, 1
        %v288 = vpop.permute.xlu0 %287
        %289 = vrot.lane.b32.xlu0 %v245, 1
        %v290 = vpop.permute.xlu0 %289
        %291 = vrot.lane.b32.xlu0 %v246, 1
        %v292 = vpop.permute.xlu0 %291
        %293 = vrot.lane.b32.xlu0 %v247, 1
        %v294 = vpop.permute.xlu0 %293
        %295 = vrot.lane.b32.xlu0 %v248, 1
        %v296 = vpop.permute.xlu0 %295
        %vm313 = vcmask 138248
        %314 = vst.msk [vmem:[#allocation2 + $0x1] sm:$0xff] %vm313, %v266
        %315 = vst.msk [vmem:[#allocation2 + $0x9] sm:$0xff] %vm313, %v268
        %316 = vst.msk [vmem:[#allocation2 + $0x19] sm:$0xff] %vm313, %v270
        %317 = vst.msk [vmem:[#allocation2 + $0x21] sm:$0xff] %vm313, %v272
        %318 = vst.msk [vmem:[#allocation2 + $0x31] sm:$0xff] %vm313, %v274
        %319 = vst.msk [vmem:[#allocation2 + $0x39] sm:$0xff] %vm313, %v276
        %320 = vst.msk [vmem:[#allocation2 + $0x49] sm:$0xff] %vm313, %v278
        %321 = vst.msk [vmem:[#allocation2 + $0x51] sm:$0xff] %vm313, %v280
        %322 = vst.msk [vmem:[#allocation2 + $0x61] sm:$0xff] %vm313, %v282
        %323 = vst.msk [vmem:[#allocation2 + $0x69] sm:$0xff] %vm313, %v284
        %324 = vst.msk [vmem:[#allocation2 + $0x79] sm:$0xff] %vm313, %v286
        %325 = vst.msk [vmem:[#allocation2 + $0x81] sm:$0xff] %vm313, %v288
        %326 = vst.msk [vmem:[#allocation2 + $0x91] sm:$0xff] %vm313, %v290
        %327 = vst.msk [vmem:[#allocation2 + $0x99] sm:$0xff] %vm313, %v292
        %328 = vst.msk [vmem:[#allocation2 + $0xa9] sm:$0xff] %vm313, %v294
        %329 = vst.msk [vmem:[#allocation2 + $0xb1] sm:$0xff] %vm313, %v296
        %s330 = sld [smem:[#allocation3]]
        %v331 = vld [vmem:[#allocation2] sm:$0xff]
        %v332 = vld [vmem:[#allocation2 + $0x8] sm:$0xff]
        %v333 = vld [vmem:[#allocation2 + $0x30] sm:$0xff]
        %v334 = vld [vmem:[#allocation2 + $0x38] sm:$0xff]
        %v335 = vld [vmem:[#allocation2 + $0x60] sm:$0xff]
        %v336 = vld [vmem:[#allocation2 + $0x68] sm:$0xff]
        %v337 = vld [vmem:[#allocation2 + $0x90] sm:$0xff]
        %v338 = vld [vmem:[#allocation2 + $0x98] sm:$0xff]
        %s339 = sld [smem:[#allocation4]]
        %v340 = vstv %s339
        %v341 = vmul.f32 %v331, %v340
        %v342 = vmul.f32 %v332, %v340
        %v343 = vmul.f32 %v333, %v340
        %v344 = vmul.f32 %v334, %v340
        %v345 = vmul.f32 %v335, %v340
        %v346 = vmul.f32 %v336, %v340
        %v347 = vmul.f32 %v337, %v340
        %v348 = vmul.f32 %v338, %v340
        %v349 = vadd.f32 %v341, 0.0
        %v350 = vadd.f32 %v342, 0.0
        %v351 = vadd.f32 %v343, 0.0
        %v352 = vadd.f32 %v344, 0.0
        %v353 = vadd.f32 %v345, 0.0
        %v354 = vadd.f32 %v346, 0.0
        %v355 = vadd.f32 %v347, 0.0
        %v356 = vadd.f32 %v348, 0.0
        %s357 = sld [smem:[#allocation4 + $0x1]]
        %v358 = vstv %s357
        %v359 = vmul.f32 %v331, %v358
        %v360 = vmul.f32 %v332, %v358
        %v361 = vmul.f32 %v333, %v358
        %v362 = vmul.f32 %v334, %v358
        %v363 = vmul.f32 %v335, %v358
        %v364 = vmul.f32 %v336, %v358
        %v365 = vmul.f32 %v337, %v358
        %v366 = vmul.f32 %v338, %v358
        %375 = vrot.lane.b32.xlu0 %v359, 127
        %v376 = vpop.permute.xlu0 %375
        %377 = vrot.lane.b32.xlu0 %v360, 127
        %v378 = vpop.permute.xlu0 %377
        %379 = vrot.lane.b32.xlu0 %v361, 127
        %v380 = vpop.permute.xlu0 %379
        %381 = vrot.lane.b32.xlu0 %v362, 127
        %v382 = vpop.permute.xlu0 %381
        %383 = vrot.lane.b32.xlu0 %v363, 127
        %v384 = vpop.permute.xlu0 %383
        %385 = vrot.lane.b32.xlu0 %v364, 127
        %v386 = vpop.permute.xlu0 %385
        %387 = vrot.lane.b32.xlu0 %v365, 127
        %v388 = vpop.permute.xlu0 %387
        %389 = vrot.lane.b32.xlu0 %v366, 127
        %v390 = vpop.permute.xlu0 %389
        %v399 = vadd.f32 %v349, %v376
        %v400 = vadd.f32 %v350, %v378
        %v401 = vadd.f32 %v351, %v380
        %v402 = vadd.f32 %v352, %v382
        %v403 = vadd.f32 %v353, %v384
        %v404 = vadd.f32 %v354, %v386
        %v405 = vadd.f32 %v355, %v388
        %v406 = vadd.f32 %v356, %v390
        %s407 = sld [smem:[#allocation4 + $0x2]]
        %v408 = vstv %s407
        %v409 = vmul.f32 %v331, %v408
        %v410 = vmul.f32 %v332, %v408
        %v411 = vmul.f32 %v333, %v408
        %v412 = vmul.f32 %v334, %v408
        %v413 = vmul.f32 %v335, %v408
        %v414 = vmul.f32 %v336, %v408
        %v415 = vmul.f32 %v337, %v408
        %v416 = vmul.f32 %v338, %v408
        %425 = vrot.lane.b32.xlu0 %v409, 126
        %v426 = vpop.permute.xlu0 %425
        %427 = vrot.lane.b32.xlu0 %v410, 126
        %v428 = vpop.permute.xlu0 %427
        %429 = vrot.lane.b32.xlu0 %v411, 126
        %v430 = vpop.permute.xlu0 %429
        %431 = vrot.lane.b32.xlu0 %v412, 126
        %v432 = vpop.permute.xlu0 %431
        %433 = vrot.lane.b32.xlu0 %v413, 126
        %v434 = vpop.permute.xlu0 %433
        %435 = vrot.lane.b32.xlu0 %v414, 126
        %v436 = vpop.permute.xlu0 %435
        %437 = vrot.lane.b32.xlu0 %v415, 126
        %v438 = vpop.permute.xlu0 %437
        %439 = vrot.lane.b32.xlu0 %v416, 126
        %v440 = vpop.permute.xlu0 %439
        %v449 = vadd.f32 %v399, %v426
        %v450 = vadd.f32 %v400, %v428
        %v451 = vadd.f32 %v401, %v430
        %v452 = vadd.f32 %v402, %v432
        %v453 = vadd.f32 %v403, %v434
        %v454 = vadd.f32 %v404, %v436
        %v455 = vadd.f32 %v405, %v438
        %v456 = vadd.f32 %v406, %v440
        %v457 = vld [vmem:[#allocation2 + $0x1] sm:$0xff]
        %v458 = vld [vmem:[#allocation2 + $0x9] sm:$0xff]
        %v459 = vld [vmem:[#allocation2 + $0x31] sm:$0xff]
        %v460 = vld [vmem:[#allocation2 + $0x39] sm:$0xff]
        %v461 = vld [vmem:[#allocation2 + $0x61] sm:$0xff]
        %v462 = vld [vmem:[#allocation2 + $0x69] sm:$0xff]
        %v463 = vld [vmem:[#allocation2 + $0x91] sm:$0xff]
        %v464 = vld [vmem:[#allocation2 + $0x99] sm:$0xff]
        %s465 = sld [smem:[#allocation4 + $0x3]]
        %v466 = vstv %s465
        %v467 = vmul.f32 %v457, %v466
        %v468 = vmul.f32 %v458, %v466
        %v469 = vmul.f32 %v459, %v466
        %v470 = vmul.f32 %v460, %v466
        %v471 = vmul.f32 %v461, %v466
        %v472 = vmul.f32 %v462, %v466
        %v473 = vmul.f32 %v463, %v466
        %v474 = vmul.f32 %v464, %v466
        %v475 = vadd.f32 %v449, %v467
        %v476 = vadd.f32 %v450, %v468
        %v477 = vadd.f32 %v451, %v469
        %v478 = vadd.f32 %v452, %v470
        %v479 = vadd.f32 %v453, %v471
        %v480 = vadd.f32 %v454, %v472
        %v481 = vadd.f32 %v455, %v473
        %v482 = vadd.f32 %v456, %v474
        %s483 = sld [smem:[#allocation4 + $0x4]]
        %v484 = vstv %s483
        %v485 = vmul.f32 %v457, %v484
        %v486 = vmul.f32 %v458, %v484
        %v487 = vmul.f32 %v459, %v484
        %v488 = vmul.f32 %v460, %v484
        %v489 = vmul.f32 %v461, %v484
        %v490 = vmul.f32 %v462, %v484
        %v491 = vmul.f32 %v463, %v484
        %v492 = vmul.f32 %v464, %v484
        %501 = vrot.lane.b32.xlu0 %v485, 127
        %v502 = vpop.permute.xlu0 %501
        %503 = vrot.lane.b32.xlu0 %v486, 127
        %v504 = vpop.permute.xlu0 %503
        %505 = vrot.lane.b32.xlu0 %v487, 127
        %v506 = vpop.permute.xlu0 %505
        %507 = vrot.lane.b32.xlu0 %v488, 127
        %v508 = vpop.permute.xlu0 %507
        %509 = vrot.lane.b32.xlu0 %v489, 127
        %v510 = vpop.permute.xlu0 %509
        %511 = vrot.lane.b32.xlu0 %v490, 127
        %v512 = vpop.permute.xlu0 %511
        %513 = vrot.lane.b32.xlu0 %v491, 127
        %v514 = vpop.permute.xlu0 %513
        %515 = vrot.lane.b32.xlu0 %v492, 127
        %v516 = vpop.permute.xlu0 %515
        %v525 = vadd.f32 %v475, %v502
        %v526 = vadd.f32 %v476, %v504
        %v527 = vadd.f32 %v477, %v506
        %v528 = vadd.f32 %v478, %v508
        %v529 = vadd.f32 %v479, %v510
        %v530 = vadd.f32 %v480, %v512
        %v531 = vadd.f32 %v481, %v514
        %v532 = vadd.f32 %v482, %v516
        %s533 = sld [smem:[#allocation4 + $0x5]]
        %v534 = vstv %s533
        %v535 = vmul.f32 %v457, %v534
        %v536 = vmul.f32 %v458, %v534
        %v537 = vmul.f32 %v459, %v534
        %v538 = vmul.f32 %v460, %v534
        %v539 = vmul.f32 %v461, %v534
        %v540 = vmul.f32 %v462, %v534
        %v541 = vmul.f32 %v463, %v534
        %v542 = vmul.f32 %v464, %v534
        %551 = vrot.lane.b32.xlu0 %v535, 126
        %v552 = vpop.permute.xlu0 %551
        %553 = vrot.lane.b32.xlu0 %v536, 126
        %v554 = vpop.permute.xlu0 %553
        %555 = vrot.lane.b32.xlu0 %v537, 126
        %v556 = vpop.permute.xlu0 %555
        %557 = vrot.lane.b32.xlu0 %v538, 126
        %v558 = vpop.permute.xlu0 %557
        %559 = vrot.lane.b32.xlu0 %v539, 126
        %v560 = vpop.permute.xlu0 %559
        %561 = vrot.lane.b32.xlu0 %v540, 126
        %v562 = vpop.permute.xlu0 %561
        %563 = vrot.lane.b32.xlu0 %v541, 126
        %v564 = vpop.permute.xlu0 %563
        %565 = vrot.lane.b32.xlu0 %v542, 126
        %v566 = vpop.permute.xlu0 %565
        %v575 = vadd.f32 %v525, %v552
        %v576 = vadd.f32 %v526, %v554
        %v577 = vadd.f32 %v527, %v556
        %v578 = vadd.f32 %v528, %v558
        %v579 = vadd.f32 %v529, %v560
        %v580 = vadd.f32 %v530, %v562
        %v581 = vadd.f32 %v531, %v564
        %v582 = vadd.f32 %v532, %v566
        %v583 = vld [vmem:[#allocation2 + $0x2] sm:$0xff]
        %v584 = vld [vmem:[#allocation2 + $0xa] sm:$0xff]
        %v585 = vld [vmem:[#allocation2 + $0x32] sm:$0xff]
        %v586 = vld [vmem:[#allocation2 + $0x3a] sm:$0xff]
        %v587 = vld [vmem:[#allocation2 + $0x62] sm:$0xff]
        %v588 = vld [vmem:[#allocation2 + $0x6a] sm:$0xff]
        %v589 = vld [vmem:[#allocation2 + $0x92] sm:$0xff]
        %v590 = vld [vmem:[#allocation2 + $0x9a] sm:$0xff]
        %s591 = sld [smem:[#allocation4 + $0x6]]
        %v592 = vstv %s591
        %v593 = vmul.f32 %v583, %v592
        %v594 = vmul.f32 %v584, %v592
        %v595 = vmul.f32 %v585, %v592
        %v596 = vmul.f32 %v586, %v592
        %v597 = vmul.f32 %v587, %v592
        %v598 = vmul.f32 %v588, %v592
        %v599 = vmul.f32 %v589, %v592
        %v600 = vmul.f32 %v590, %v592
        %v601 = vadd.f32 %v575, %v593
        %v602 = vadd.f32 %v576, %v594
        %v603 = vadd.f32 %v577, %v595
        %v604 = vadd.f32 %v578, %v596
        %v605 = vadd.f32 %v579, %v597
        %v606 = vadd.f32 %v580, %v598
        %v607 = vadd.f32 %v581, %v599
        %v608 = vadd.f32 %v582, %v600
        %s609 = sld [smem:[#allocation4 + $0x7]]
        %v610 = vstv %s609
        %v611 = vmul.f32 %v583, %v610
        %v612 = vmul.f32 %v584, %v610
        %v613 = vmul.f32 %v585, %v610
        %v614 = vmul.f32 %v586, %v610
        %v615 = vmul.f32 %v587, %v610
        %v616 = vmul.f32 %v588, %v610
        %v617 = vmul.f32 %v589, %v610
        %v618 = vmul.f32 %v590, %v610
        %627 = vrot.lane.b32.xlu0 %v611, 127
        %v628 = vpop.permute.xlu0 %627
        %629 = vrot.lane.b32.xlu0 %v612, 127
        %v630 = vpop.permute.xlu0 %629
        %631 = vrot.lane.b32.xlu0 %v613, 127
        %v632 = vpop.permute.xlu0 %631
        %633 = vrot.lane.b32.xlu0 %v614, 127
        %v634 = vpop.permute.xlu0 %633
        %635 = vrot.lane.b32.xlu0 %v615, 127
        %v636 = vpop.permute.xlu0 %635
        %637 = vrot.lane.b32.xlu0 %v616, 127
        %v638 = vpop.permute.xlu0 %637
        %639 = vrot.lane.b32.xlu0 %v617, 127
        %v640 = vpop.permute.xlu0 %639
        %641 = vrot.lane.b32.xlu0 %v618, 127
        %v642 = vpop.permute.xlu0 %641
        %v651 = vadd.f32 %v601, %v628
        %v652 = vadd.f32 %v602, %v630
        %v653 = vadd.f32 %v603, %v632
        %v654 = vadd.f32 %v604, %v634
        %v655 = vadd.f32 %v605, %v636
        %v656 = vadd.f32 %v606, %v638
        %v657 = vadd.f32 %v607, %v640
        %v658 = vadd.f32 %v608, %v642
        %s659 = sld [smem:[#allocation4 + $0x8]]
        %v660 = vstv %s659
        %v661 = vmul.f32 %v583, %v660
        %v662 = vmul.f32 %v584, %v660
        %v663 = vmul.f32 %v585, %v660
        %v664 = vmul.f32 %v586, %v660
        %v665 = vmul.f32 %v587, %v660
        %v666 = vmul.f32 %v588, %v660
        %v667 = vmul.f32 %v589, %v660
        %v668 = vmul.f32 %v590, %v660
        %677 = vrot.lane.b32.xlu0 %v661, 126
        %v678 = vpop.permute.xlu0 %677
        %679 = vrot.lane.b32.xlu0 %v662, 126
        %v680 = vpop.permute.xlu0 %679
        %681 = vrot.lane.b32.xlu0 %v663, 126
        %v682 = vpop.permute.xlu0 %681
        %683 = vrot.lane.b32.xlu0 %v664, 126
        %v684 = vpop.permute.xlu0 %683
        %685 = vrot.lane.b32.xlu0 %v665, 126
        %v686 = vpop.permute.xlu0 %685
        %687 = vrot.lane.b32.xlu0 %v666, 126
        %v688 = vpop.permute.xlu0 %687
        %689 = vrot.lane.b32.xlu0 %v667, 126
        %v690 = vpop.permute.xlu0 %689
        %691 = vrot.lane.b32.xlu0 %v668, 126
        %v692 = vpop.permute.xlu0 %691
        %v701 = vadd.f32 %v651, %v678
        %v702 = vadd.f32 %v652, %v680
        %v703 = vadd.f32 %v653, %v682
        %v704 = vadd.f32 %v654, %v684
        %v705 = vadd.f32 %v655, %v686
        %v706 = vadd.f32 %v656, %v688
        %v707 = vadd.f32 %v657, %v690
        %v708 = vadd.f32 %v658, %v692
        %s709 = scalar_lea.vmem [#allocation2], 24
        %v710 = vld [vmem:[%s709] sm:$0xff]
        %v711 = vld [vmem:[%s709 + $0x8] sm:$0xff]
        %v712 = vld [vmem:[%s709 + $0x30] sm:$0xff]
        %v713 = vld [vmem:[%s709 + $0x38] sm:$0xff]
        %v714 = vld [vmem:[%s709 + $0x60] sm:$0xff]
        %v715 = vld [vmem:[%s709 + $0x68] sm:$0xff]
        %v716 = vld [vmem:[%s709 + $0x90] sm:$0xff]
        %v717 = vld [vmem:[%s709 + $0x98] sm:$0xff]
        %s718 = sld [smem:[#allocation4 + $0x9]]
        %v719 = vstv %s718
        %v720 = vmul.f32 %v710, %v719
        %v721 = vmul.f32 %v711, %v719
        %v722 = vmul.f32 %v712, %v719
        %v723 = vmul.f32 %v713, %v719
        %v724 = vmul.f32 %v714, %v719
        %v725 = vmul.f32 %v715, %v719
        %v726 = vmul.f32 %v716, %v719
        %v727 = vmul.f32 %v717, %v719
        %v728 = vadd.f32 %v701, %v720
        %v729 = vadd.f32 %v702, %v721
        %v730 = vadd.f32 %v703, %v722
        %v731 = vadd.f32 %v704, %v723
        %v732 = vadd.f32 %v705, %v724
        %v733 = vadd.f32 %v706, %v725
        %v734 = vadd.f32 %v707, %v726
        %v735 = vadd.f32 %v708, %v727
        %s736 = sld [smem:[#allocation4 + $0xa]]
        %v737 = vstv %s736
        %v738 = vmul.f32 %v710, %v737
        %v739 = vmul.f32 %v711, %v737
        %v740 = vmul.f32 %v712, %v737
        %v741 = vmul.f32 %v713, %v737
        %v742 = vmul.f32 %v714, %v737
        %v743 = vmul.f32 %v715, %v737
        %v744 = vmul.f32 %v716, %v737
        %v745 = vmul.f32 %v717, %v737
        %754 = vrot.lane.b32.xlu0 %v738, 127
        %v755 = vpop.permute.xlu0 %754
        %756 = vrot.lane.b32.xlu0 %v739, 127
        %v757 = vpop.permute.xlu0 %756
        %758 = vrot.lane.b32.xlu0 %v740, 127
        %v759 = vpop.permute.xlu0 %758
        %760 = vrot.lane.b32.xlu0 %v741, 127
        %v761 = vpop.permute.xlu0 %760
        %762 = vrot.lane.b32.xlu0 %v742, 127
        %v763 = vpop.permute.xlu0 %762
        %764 = vrot.lane.b32.xlu0 %v743, 127
        %v765 = vpop.permute.xlu0 %764
        %766 = vrot.lane.b32.xlu0 %v744, 127
        %v767 = vpop.permute.xlu0 %766
        %768 = vrot.lane.b32.xlu0 %v745, 127
        %v769 = vpop.permute.xlu0 %768
        %v778 = vadd.f32 %v728, %v755
        %v779 = vadd.f32 %v729, %v757
        %v780 = vadd.f32 %v730, %v759
        %v781 = vadd.f32 %v731, %v761
        %v782 = vadd.f32 %v732, %v763
        %v783 = vadd.f32 %v733, %v765
        %v784 = vadd.f32 %v734, %v767
        %v785 = vadd.f32 %v735, %v769
        %s786 = sld [smem:[#allocation4 + $0xb]]
        %v787 = vstv %s786
        %v788 = vmul.f32 %v710, %v787
        %v789 = vmul.f32 %v711, %v787
        %v790 = vmul.f32 %v712, %v787
        %v791 = vmul.f32 %v713, %v787
        %v792 = vmul.f32 %v714, %v787
        %v793 = vmul.f32 %v715, %v787
        %v794 = vmul.f32 %v716, %v787
        %v795 = vmul.f32 %v717, %v787
        %804 = vrot.lane.b32.xlu0 %v788, 126
        %v805 = vpop.permute.xlu0 %804
        %806 = vrot.lane.b32.xlu0 %v789, 126
        %v807 = vpop.permute.xlu0 %806
        %808 = vrot.lane.b32.xlu0 %v790, 126
        %v809 = vpop.permute.xlu0 %808
        %810 = vrot.lane.b32.xlu0 %v791, 126
        %v811 = vpop.permute.xlu0 %810
        %812 = vrot.lane.b32.xlu0 %v792, 126
        %v813 = vpop.permute.xlu0 %812
        %814 = vrot.lane.b32.xlu0 %v793, 126
        %v815 = vpop.permute.xlu0 %814
        %816 = vrot.lane.b32.xlu0 %v794, 126
        %v817 = vpop.permute.xlu0 %816
        %818 = vrot.lane.b32.xlu0 %v795, 126
        %v819 = vpop.permute.xlu0 %818
        %v828 = vadd.f32 %v778, %v805
        %v829 = vadd.f32 %v779, %v807
        %v830 = vadd.f32 %v780, %v809
        %v831 = vadd.f32 %v781, %v811
        %v832 = vadd.f32 %v782, %v813
        %v833 = vadd.f32 %v783, %v815
        %v834 = vadd.f32 %v784, %v817
        %v835 = vadd.f32 %v785, %v819
        %v836 = vld [vmem:[%s709 + $0x1] sm:$0xff]
        %v837 = vld [vmem:[%s709 + $0x9] sm:$0xff]
        %v838 = vld [vmem:[%s709 + $0x31] sm:$0xff]
        %v839 = vld [vmem:[%s709 + $0x39] sm:$0xff]
        %v840 = vld [vmem:[%s709 + $0x61] sm:$0xff]
        %v841 = vld [vmem:[%s709 + $0x69] sm:$0xff]
        %v842 = vld [vmem:[%s709 + $0x91] sm:$0xff]
        %v843 = vld [vmem:[%s709 + $0x99] sm:$0xff]
        %s844 = sld [smem:[#allocation4 + $0xc]]
        %v845 = vstv %s844
        %v846 = vmul.f32 %v836, %v845
        %v847 = vmul.f32 %v837, %v845
        %v848 = vmul.f32 %v838, %v845
        %v849 = vmul.f32 %v839, %v845
        %v850 = vmul.f32 %v840, %v845
        %v851 = vmul.f32 %v841, %v845
        %v852 = vmul.f32 %v842, %v845
        %v853 = vmul.f32 %v843, %v845
        %v854 = vadd.f32 %v828, %v846
        %v855 = vadd.f32 %v829, %v847
        %v856 = vadd.f32 %v830, %v848
        %v857 = vadd.f32 %v831, %v849
        %v858 = vadd.f32 %v832, %v850
        %v859 = vadd.f32 %v833, %v851
        %v860 = vadd.f32 %v834, %v852
        %v861 = vadd.f32 %v835, %v853
        %s862 = sld [smem:[#allocation4 + $0xd]]
        %v863 = vstv %s862
        %v864 = vmul.f32 %v836, %v863
        %v865 = vmul.f32 %v837, %v863
        %v866 = vmul.f32 %v838, %v863
        %v867 = vmul.f32 %v839, %v863
        %v868 = vmul.f32 %v840, %v863
        %v869 = vmul.f32 %v841, %v863
        %v870 = vmul.f32 %v842, %v863
        %v871 = vmul.f32 %v843, %v863
        %880 = vrot.lane.b32.xlu0 %v864, 127
        %v881 = vpop.permute.xlu0 %880
        %882 = vrot.lane.b32.xlu0 %v865, 127
        %v883 = vpop.permute.xlu0 %882
        %884 = vrot.lane.b32.xlu0 %v866, 127
        %v885 = vpop.permute.xlu0 %884
        %886 = vrot.lane.b32.xlu0 %v867, 127
        %v887 = vpop.permute.xlu0 %886
        %888 = vrot.lane.b32.xlu0 %v868, 127
        %v889 = vpop.permute.xlu0 %888
        %890 = vrot.lane.b32.xlu0 %v869, 127
        %v891 = vpop.permute.xlu0 %890
        %892 = vrot.lane.b32.xlu0 %v870, 127
        %v893 = vpop.permute.xlu0 %892
        %894 = vrot.lane.b32.xlu0 %v871, 127
        %v895 = vpop.permute.xlu0 %894
        %v904 = vadd.f32 %v854, %v881
        %v905 = vadd.f32 %v855, %v883
        %v906 = vadd.f32 %v856, %v885
        %v907 = vadd.f32 %v857, %v887
        %v908 = vadd.f32 %v858, %v889
        %v909 = vadd.f32 %v859, %v891
        %v910 = vadd.f32 %v860, %v893
        %v911 = vadd.f32 %v861, %v895
        %s912 = sld [smem:[#allocation4 + $0xe]]
        %v913 = vstv %s912
        %v914 = vmul.f32 %v836, %v913
        %v915 = vmul.f32 %v837, %v913
        %v916 = vmul.f32 %v838, %v913
        %v917 = vmul.f32 %v839, %v913
        %v918 = vmul.f32 %v840, %v913
        %v919 = vmul.f32 %v841, %v913
        %v920 = vmul.f32 %v842, %v913
        %v921 = vmul.f32 %v843, %v913
        %930 = vrot.lane.b32.xlu0 %v914, 126
        %v931 = vpop.permute.xlu0 %930
        %932 = vrot.lane.b32.xlu0 %v915, 126
        %v933 = vpop.permute.xlu0 %932
        %934 = vrot.lane.b32.xlu0 %v916, 126
        %v935 = vpop.permute.xlu0 %934
        %936 = vrot.lane.b32.xlu0 %v917, 126
        %v937 = vpop.permute.xlu0 %936
        %938 = vrot.lane.b32.xlu0 %v918, 126
        %v939 = vpop.permute.xlu0 %938
        %940 = vrot.lane.b32.xlu0 %v919, 126
        %v941 = vpop.permute.xlu0 %940
        %942 = vrot.lane.b32.xlu0 %v920, 126
        %v943 = vpop.permute.xlu0 %942
        %944 = vrot.lane.b32.xlu0 %v921, 126
        %v945 = vpop.permute.xlu0 %944
        %v954 = vadd.f32 %v904, %v931
        %v955 = vadd.f32 %v905, %v933
        %v956 = vadd.f32 %v906, %v935
        %v957 = vadd.f32 %v907, %v937
        %v958 = vadd.f32 %v908, %v939
        %v959 = vadd.f32 %v909, %v941
        %v960 = vadd.f32 %v910, %v943
        %v961 = vadd.f32 %v911, %v945
        %v962 = vld [vmem:[%s709 + $0x2] sm:$0xff]
        %v963 = vld [vmem:[%s709 + $0xa] sm:$0xff]
        %v964 = vld [vmem:[%s709 + $0x32] sm:$0xff]
        %v965 = vld [vmem:[%s709 + $0x3a] sm:$0xff]
        %v966 = vld [vmem:[%s709 + $0x62] sm:$0xff]
        %v967 = vld [vmem:[%s709 + $0x6a] sm:$0xff]
        %v968 = vld [vmem:[%s709 + $0x92] sm:$0xff]
        %v969 = vld [vmem:[%s709 + $0x9a] sm:$0xff]
        %s970 = sld [smem:[#allocation4 + $0xf]]
        %v971 = vstv %s970
        %v972 = vmul.f32 %v962, %v971
        %v973 = vmul.f32 %v963, %v971
        %v974 = vmul.f32 %v964, %v971
        %v975 = vmul.f32 %v965, %v971
        %v976 = vmul.f32 %v966, %v971
        %v977 = vmul.f32 %v967, %v971
        %v978 = vmul.f32 %v968, %v971
        %v979 = vmul.f32 %v969, %v971
        %v980 = vadd.f32 %v954, %v972
        %v981 = vadd.f32 %v955, %v973
        %v982 = vadd.f32 %v956, %v974
        %v983 = vadd.f32 %v957, %v975
        %v984 = vadd.f32 %v958, %v976
        %v985 = vadd.f32 %v959, %v977
        %v986 = vadd.f32 %v960, %v978
        %v987 = vadd.f32 %v961, %v979
        %s988 = sld [smem:[#allocation4 + $0x10]]
        %v989 = vstv %s988
        %v990 = vmul.f32 %v962, %v989
        %v991 = vmul.f32 %v963, %v989
        %v992 = vmul.f32 %v964, %v989
        %v993 = vmul.f32 %v965, %v989
        %v994 = vmul.f32 %v966, %v989
        %v995 = vmul.f32 %v967, %v989
        %v996 = vmul.f32 %v968, %v989
        %v997 = vmul.f32 %v969, %v989
        %1006 = vrot.lane.b32.xlu0 %v990, 127
        %v1007 = vpop.permute.xlu0 %1006
        %1008 = vrot.lane.b32.xlu0 %v991, 127
        %v1009 = vpop.permute.xlu0 %1008
        %1010 = vrot.lane.b32.xlu0 %v992, 127
        %v1011 = vpop.permute.xlu0 %1010
        %1012 = vrot.lane.b32.xlu0 %v993, 127
        %v1013 = vpop.permute.xlu0 %1012
        %1014 = vrot.lane.b32.xlu0 %v994, 127
        %v1015 = vpop.permute.xlu0 %1014
        %1016 = vrot.lane.b32.xlu0 %v995, 127
        %v1017 = vpop.permute.xlu0 %1016
        %1018 = vrot.lane.b32.xlu0 %v996, 127
        %v1019 = vpop.permute.xlu0 %1018
        %1020 = vrot.lane.b32.xlu0 %v997, 127
        %v1021 = vpop.permute.xlu0 %1020
        %v1030 = vadd.f32 %v980, %v1007
        %v1031 = vadd.f32 %v981, %v1009
        %v1032 = vadd.f32 %v982, %v1011
        %v1033 = vadd.f32 %v983, %v1013
        %v1034 = vadd.f32 %v984, %v1015
        %v1035 = vadd.f32 %v985, %v1017
        %v1036 = vadd.f32 %v986, %v1019
        %v1037 = vadd.f32 %v987, %v1021
        %s1038 = sld [smem:[#allocation4 + $0x11]]
        %v1039 = vstv %s1038
        %v1040 = vmul.f32 %v962, %v1039
        %v1041 = vmul.f32 %v963, %v1039
        %v1042 = vmul.f32 %v964, %v1039
        %v1043 = vmul.f32 %v965, %v1039
        %v1044 = vmul.f32 %v966, %v1039
        %v1045 = vmul.f32 %v967, %v1039
        %v1046 = vmul.f32 %v968, %v1039
        %v1047 = vmul.f32 %v969, %v1039
        %1056 = vrot.lane.b32.xlu0 %v1040, 126
        %v1057 = vpop.permute.xlu0 %1056
        %1058 = vrot.lane.b32.xlu0 %v1041, 126
        %v1059 = vpop.permute.xlu0 %1058
        %1060 = vrot.lane.b32.xlu0 %v1042, 126
        %v1061 = vpop.permute.xlu0 %1060
        %1062 = vrot.lane.b32.xlu0 %v1043, 126
        %v1063 = vpop.permute.xlu0 %1062
        %1064 = vrot.lane.b32.xlu0 %v1044, 126
        %v1065 = vpop.permute.xlu0 %1064
        %1066 = vrot.lane.b32.xlu0 %v1045, 126
        %v1067 = vpop.permute.xlu0 %1066
        %1068 = vrot.lane.b32.xlu0 %v1046, 126
        %v1069 = vpop.permute.xlu0 %1068
        %1070 = vrot.lane.b32.xlu0 %v1047, 126
        %v1071 = vpop.permute.xlu0 %1070
        %v1080 = vadd.f32 %v1030, %v1057
        %v1081 = vadd.f32 %v1031, %v1059
        %v1082 = vadd.f32 %v1032, %v1061
        %v1083 = vadd.f32 %v1033, %v1063
        %v1084 = vadd.f32 %v1034, %v1065
        %v1085 = vadd.f32 %v1035, %v1067
        %v1086 = vadd.f32 %v1036, %v1069
        %v1087 = vadd.f32 %v1037, %v1071
        %v1088 = vstv %s330
        %v1089 = vadd.f32 %v1080, %v1088
        %v1090 = vadd.f32 %v1081, %v1088
        %v1091 = vadd.f32 %v1082, %v1088
        %v1092 = vadd.f32 %v1083, %v1088
        %v1093 = vadd.f32 %v1084, %v1088
        %v1094 = vadd.f32 %v1085, %v1088
        %v1095 = vadd.f32 %v1086, %v1088
        %v1096 = vadd.f32 %v1087, %v1088
        %vm1097 = vcmask 130048
        %1098 = vst.msk [vmem:[%s204] sm:$0xff] %vm1097, %v1089
        %1099 = vst.msk [vmem:[%s204 + $0x8] sm:$0xff] %vm1097, %v1090
        %1100 = vst.msk [vmem:[%s204 + $0x10] sm:$0xff] %vm1097, %v1091
        %1101 = vst.msk [vmem:[%s204 + $0x18] sm:$0xff] %vm1097, %v1092
        %1102 = vst.msk [vmem:[%s204 + $0x20] sm:$0xff] %vm1097, %v1093
        %1103 = vst.msk [vmem:[%s204 + $0x28] sm:$0xff] %vm1097, %v1094
        %1104 = vst.msk [vmem:[%s204 + $0x30] sm:$0xff] %vm1097, %v1095
        %1105 = vst.msk [vmem:[%s204 + $0x38] sm:$0xff] %vm1097, %v1096
        %s1106 = sand.u32 %s98, 1
        %s1107 = scalar_lea.sflag [#allocation6], %s1106
        %s1108 = sand.u32 %s98, 1
        %s1109 = smul.addr %s1108, 64
        %s1110 = scalar_lea.vmem [#allocation9], %s1109
        // Predicated region
        $region41: #{tpu_custom_call.1} parent=31 // pred_check
          %p1111 = pneg %p108
        $region42: #{tpu_custom_call.1} parent=31 // pred_check_branch
          %1113 = sbr.rel (%p1111) target = $region44
        $region43: #{tpu_custom_call.1} parent=31 // pred_region
          %s1114 = smul.u32 4, %s22
          %s1116 = ssub.s32 1024, 1024
          %1117 = vsyncadd %s1107, %s1116
          %s1118 = smul.addr %s1114, 2
          %s1119 = smul.addr %s1118, 128
          %s1120 = scalar_lea.hbm %s3, %s1119
          %s1121 = sshll.u32 %s1110, 4
          %s1122 = int_to_ptr.vmem [resolvable:$true] %s1121
          %1127 = dma.vmem_to_hbm [thread:$0]  %s1122, 1024, %s1120, %s1107, 128, 128, 8
        $region44: #{tpu_custom_call.1} parent=31 // pred_fallthru
          _
      $region32: #{tpu_custom_call.1} parent=5 // pred_fallthru
        _
      %p1128 = scmp.le.s32.totalorder 2, %s17
      // Predicated region
      $region45: #{tpu_custom_call.1} parent=5 // pred_check
        %p1129 = pneg %p1128
      $region46: #{tpu_custom_call.1} parent=5 // pred_check_branch
        %1131 = sbr.rel (%p1129) target = $region48
      $region47: #{tpu_custom_call.1} parent=5 // pred_region
        %s1132 = ssub.s32 %s17, 2
        // Predicated region
        $region49: #{tpu_custom_call.1} parent=47 // pred_check
          %p1133 = pneg %p114
        $region50: #{tpu_custom_call.1} parent=47 // pred_check_branch
          %1135 = sbr.rel (%p1133) target = $region52
        $region51: #{tpu_custom_call.1} parent=47 // pred_region
          %s1136 = sand.u32 %s99, 1
          %s1137 = scalar_lea.sflag [#allocation6], %s1136
          %s1138 = sand.u32 %s99, 1
          %s1139 = smul.addr %s1138, 64
          %s1140 = scalar_lea.vmem [#allocation9], %s1139
          %1141 = dma.done %s1137, 1024
        $region52: #{tpu_custom_call.1} parent=47 // pred_fallthru
          _
      $region48: #{tpu_custom_call.1} parent=5 // pred_fallthru
        _
    $region6: #{tpu_custom_call.1} parent=1 // loop_footer
      %s21 = sadd.s32 1, %s17
    $region7: #{tpu_custom_call.1} parent=1 // loop_footer_branch
      %16 = sbr.rel target = $region3
    $region8: #{tpu_custom_call.1} parent=1 // loop_exit
      _
    %1142 = vsyncpa [#allocation5], 1
    %s1143 = scalar_lea.sflag [#allocation5], 1
    %1144 = vsyncpa %s1143, 1
    %1145 = vsyncpa [#allocation6], 1
    %s1146 = scalar_lea.sflag [#allocation6], 1
    %1147 = vsyncpa %s1146, 1
    %1148 = vsyncpa [#allocation7], 1
    %s1149 = scalar_lea.sflag [#allocation7], 1
    %1150 = vsyncpa %s1149, 1

</llo_original>
